<compile_context>
chip_gen: v5e
topology: v5e:2x2
jax: 0.10.0
libtpu: 0.0.40
codegen_flags: <defaults>
</compile_context>

<pallas_src>
import jax
import jax.numpy as jnp
import numpy as np
from jax.experimental import pallas as pl
from jax.experimental.pallas import tpu as pltpu

RATIO = 1.0  # self.ratio = 1 in the module
_NORM_EPS = 1e-12


def _round_up(x, m):
    return (x + m - 1) // m * m


def _default_block_b():
    try:
        kind = jax.devices()[0].device_kind.lower()
    except Exception:
        return 256
    # v5e/v5p MXU is 128-wide; v6e/v7x are 256-wide.
    return 128 if "v5" in kind else 256


def resmlp_clip_kernel(imgf_ref, txt_ref, w1_ref, b1_ref, w2_ref, b2_ref,
                       logits_ref, imgn_ref):
    """Batch tile i, class tile j: mlp_visual -> residual -> L2 norm -> logits."""
    j = pl.program_id(1)

    # The bottleneck MLP, residual add and normalisation only depend on the
    # batch tile, so run them once per i (the imgn block is resident across j).
    @pl.when(j == 0)
    def _():
        f_lo = imgf_ref[...]                                   # [TB, D] bf16
        f = f_lo.astype(jnp.float32)

        # mlp_visual.linear1 (D -> D//16): bf16 operands on MXU, f32 acc.
        h = jnp.dot(f_lo, w1_ref[...],
                    preferred_element_type=jnp.float32) + b1_ref[...]
        h = jnp.maximum(h, 0.0)                                # ReLU (f32)

        # mlp_visual.linear2 (D//16 -> D): bf16 operands, f32 acc.
        x = jnp.dot(h.astype(jnp.bfloat16), w2_ref[...],
                    preferred_element_type=jnp.float32) + b2_ref[...]

        # image_features = ratio * x + ratio * image_features   (f32)
        img = RATIO * x + RATIO * f

        # image_features / image_features.norm(dim=-1, keepdim=True)
        inv = jax.lax.rsqrt(jnp.sum(img * img, axis=-1, keepdims=True)
                            + _NORM_EPS)
        imgn_ref[...] = (img * inv).astype(imgn_ref.dtype)

    # logits = exp(logit_scale) * image_features @ text_features.t()
    # exp(logit_scale) and the text L2-norm are folded into txt_ref (wrapper),
    # which is already laid out as [D, TN] (canonical MXU [K, N]).
    logits = jnp.dot(imgn_ref[...], txt_ref[...],
                     preferred_element_type=jnp.float32)
    logits_ref[...] = logits.astype(logits_ref.dtype)


def resmlp_custom_clip_forward(img_feats, txt_feats, w1, b1, w2, b2,
                               logit_scale, *, block_b=None, block_t=2048):
    """img_feats [B, D], txt_feats [T, D]; weights stored as [in, out]."""
    B, D = img_feats.shape
    T = txt_feats.shape[0]
    Hd = w1.shape[1]

    if block_b is None:
        block_b = _default_block_b()

    # Hoisted text L2 normalisation with exp(logit_scale) folded in, then
    # pre-transposed to [D, T] so the kernel RHS is already [K, N].
    t32 = txt_feats.astype(jnp.float32)
    txt_n = t32 * jax.lax.rsqrt(jnp.sum(t32 * t32, axis=-1, keepdims=True)
                                + _NORM_EPS)
    scale = jnp.exp(jnp.asarray(logit_scale, jnp.float32))
    txt_b = (scale * txt_n).T.astype(jnp.bfloat16)             # [D, T]

    # Hardware-aligned tiling: batch tile is a multiple of 16 sublanes (bf16
    # packing); class tile is a lane-dense multiple of 128.
    TB = min(block_b, _round_up(B, 16))
    if _round_up(B, TB) // TB < 2 and TB > 16:
        # Keep >= 2 batch tiles when B allows, so the parallel axis can be
        # sharded across both v7x TensorCores.
        TB = max(16, _round_up(-(-B // 2), 16))
    B_pad = _round_up(B, TB)

    TN = min(block_t, _round_up(T, 128))
    T_pad = _round_up(T, TN)

    # Only materialise padded copies when actually needed.
    img_b = img_feats.astype(jnp.bfloat16)
    if B_pad != B:
        img_p = jnp.zeros((B_pad, D), jnp.bfloat16).at[:B].set(img_b)
    else:
        img_p = img_b
    if T_pad != T:
        txt_p = jnp.zeros((D, T_pad), jnp.bfloat16).at[:, :T].set(txt_b)
    else:
        txt_p = txt_b

    w1b = w1.astype(jnp.bfloat16)
    w2b = w2.astype(jnp.bfloat16)
    b1f = b1.astype(jnp.float32).reshape(1, Hd)
    b2f = b2.astype(jnp.float32).reshape(1, D)

    grid = (B_pad // TB, T_pad // TN)

    # VMEM budget: double-buffered per-tile blocks + resident weights.
    per_tile = 2 * (TB * D * 2 + D * TN * 2 + TB * TN * 2 + TB * D * 2)
    resident = 2 * (D * Hd * 2 + Hd * D * 2 + (Hd + D) * 4)
    vmem_limit = int(min(100 * 1024 * 1024,
                         max(16 * 1024 * 1024, 2 * (per_tile + resident))))

    flops = B_pad * (4 * D * Hd + 2 * D * T_pad)
    bytes_accessed = (img_p.nbytes + txt_p.nbytes + w1b.nbytes + w2b.nbytes
                      + b1f.nbytes + b2f.nbytes
                      + B_pad * T_pad * 2 + B_pad * D * 2)

    logits_p, imgn_p = pl.pallas_call(
        resmlp_clip_kernel,
        grid=grid,
        in_specs=[
            pl.BlockSpec((TB, D), lambda i, j: (i, 0)),     # image tile
            pl.BlockSpec((D, TN), lambda i, j: (0, j)),     # scaled text tile
            pl.BlockSpec((D, Hd), lambda i, j: (0, 0)),     # linear1 weight
            pl.BlockSpec((1, Hd), lambda i, j: (0, 0)),     # linear1 bias
            pl.BlockSpec((Hd, D), lambda i, j: (0, 0)),     # linear2 weight
            pl.BlockSpec((1, D), lambda i, j: (0, 0)),      # linear2 bias
        ],
        out_specs=[
            pl.BlockSpec((TB, TN), lambda i, j: (i, j)),    # logits tile
            pl.BlockSpec((TB, D), lambda i, j: (i, 0)),     # normalized image
        ],
        out_shape=[
            jax.ShapeDtypeStruct((B_pad, T_pad), jnp.bfloat16),
            jax.ShapeDtypeStruct((B_pad, D), jnp.bfloat16),
        ],
        compiler_params=pltpu.CompilerParams(
            dimension_semantics=("parallel", "arbitrary"),
            vmem_limit_bytes=vmem_limit),
        cost_estimate=pl.CostEstimate(
            flops=int(flops),
            transcendentals=int(B_pad),
            bytes_accessed=int(bytes_accessed)),
    )(img_p, txt_p, w1b, b1f, w2b, b2f)

    logits = logits_p if (B_pad == B and T_pad == T) else logits_p[:B, :T]
    imgn = imgn_p if B_pad == B else imgn_p[:B]
    return logits, imgn


def _reference(img_feats, txt_feats, w1, b1, w2, b2, logit_scale):
    """Plain-JAX reference mirroring the kernel's bf16-operand / f32-acc math."""
    bf = lambda a: a.astype(jnp.bfloat16).astype(jnp.float32)
    f = bf(img_feats)
    h = jnp.maximum(f @ bf(w1) + b1, 0.0)
    x = bf(h) @ bf(w2) + b2
    img = RATIO * x + RATIO * f
    img_n = img / jnp.linalg.norm(img, axis=-1, keepdims=True)
    txt_n = txt_feats / jnp.linalg.norm(txt_feats, axis=-1, keepdims=True)
    logits = bf(img_n) @ bf(jnp.exp(logit_scale) * txt_n).T
    return logits, img_n


if __name__ == "__main__":
    key = jax.random.PRNGKey(0)
    B, C, Himg, Wimg = 2, 3, 16, 16          # small synthetic image batch (NCHW)
    T, L, vocab = 8, 4, 64                   # 8 "classes", 4 tokens each
    D = 512                                  # embed_dim
    Hd = D // 16                             # bottleneck dim = 32

    ks = jax.random.split(key, 8)
    image = jax.random.normal(ks[0], (B, C, Himg, Wimg), jnp.float32)
    text_input = jax.random.randint(ks[1], (T, L), 0, vocab)

    # TODO(synk): clip.visual / clip.encode_text are full CLIP encoders; stubbed
    # here as a deterministic linear projection and a token-embedding mean.
    w_vis = jax.random.normal(ks[2], (C * Himg * Wimg, D), jnp.float32) * 0.02
    tok_emb = jax.random.normal(ks[3], (vocab, D), jnp.float32) * 0.02
    img_feats = image.reshape(B, -1) @ w_vis                     # [B, D]
    txt_feats = jnp.mean(tok_emb[text_input], axis=1)            # [T, D]

    # mlp_visual parameters (stored already transposed: y = x @ W + b)
    w1 = jax.random.normal(ks[4], (D, Hd), jnp.float32) * (1.0 / np.sqrt(D))
    b1 = jax.random.normal(ks[5], (1, Hd), jnp.float32) * 0.01
    w2 = jax.random.normal(ks[6], (Hd, D), jnp.float32) * (1.0 / np.sqrt(Hd))
    b2 = jax.random.normal(ks[7], (1, D), jnp.float32) * 0.01
    logit_scale = float(np.log(1.0 / 0.07))                      # CLIP default init

    logits, img_norm = resmlp_custom_clip_forward(
        img_feats, txt_feats, w1, b1, w2, b2, logit_scale)
    jax.block_until_ready((logits, img_norm))

    ref_logits, ref_img = _reference(img_feats, txt_feats, w1, b1, w2, b2,
                                     logit_scale)
    np.testing.assert_allclose(np.asarray(logits.astype(jnp.float32)),
                               np.asarray(ref_logits),
                               rtol=2e-2, atol=2e-2)
    np.testing.assert_allclose(np.asarray(img_norm.astype(jnp.float32)),
                               np.asarray(ref_img),
                               rtol=2e-2, atol=2e-2)
    print("KERNEL_OK")
</pallas_src>

<mosaic_0001>
module attributes {stable_mosaic.version = 11 : i64} {
  func.func @resmlp_clip_kernel(%arg0: i32, %arg1: i32, %arg2: memref<16x512xbf16, #tpu.memory_space<vmem>>, %arg3: memref<512x128xbf16, #tpu.memory_space<vmem>>, %arg4: memref<512x32xbf16, #tpu.memory_space<vmem>>, %arg5: memref<1x32xf32, #tpu.memory_space<vmem>>, %arg6: memref<32x512xbf16, #tpu.memory_space<vmem>>, %arg7: memref<1x512xf32, #tpu.memory_space<vmem>>, %arg8: memref<16x128xbf16, #tpu.memory_space<vmem>>, %arg9: memref<16x512xbf16, #tpu.memory_space<vmem>>) attributes {dimension_semantics = [#tpu.dimension_semantics<parallel>, #tpu.dimension_semantics<arbitrary>], iteration_bounds = array<i64: 1, 1>, scalar_prefetch = 0 : i64, scratch_operands = 0 : i64, tpu.core_type = #tpu.core_type<tc>, window_params = [{transform_indices = @transform_0, window_bounds = array<i64: 16, 512>}, {transform_indices = @transform_1, window_bounds = array<i64: 512, 128>}, {pipeline_mode = #tpu.pipeline_mode<synchronous>, transform_indices = @transform_2, window_bounds = array<i64: 512, 32>}, {pipeline_mode = #tpu.pipeline_mode<synchronous>, transform_indices = @transform_3, window_bounds = array<i64: 1, 32>}, {pipeline_mode = #tpu.pipeline_mode<synchronous>, transform_indices = @transform_4, window_bounds = array<i64: 32, 512>}, {pipeline_mode = #tpu.pipeline_mode<synchronous>, transform_indices = @transform_5, window_bounds = array<i64: 1, 512>}, {transform_indices = @transform_6, window_bounds = array<i64: 16, 128>}, {transform_indices = @transform_7, window_bounds = array<i64: 16, 512>}]} {
    %c0_i32 = arith.constant 0 : i32
    %0 = arith.cmpi eq, %arg1, %c0_i32 : i32
    %1 = arith.extui %0 : i1 to i32
    %c0_i32_0 = arith.constant 0 : i32
    %2 = arith.cmpi ne, %1, %c0_i32_0 : i32
    scf.if %2 {
      %c0_6 = arith.constant 0 : index
      %c0_7 = arith.constant 0 : index
      %8 = vector.load %arg2[%c0_6, %c0_7] : memref<16x512xbf16, #tpu.memory_space<vmem>>, vector<16x512xbf16>
      %9 = arith.extf %8 : vector<16x512xbf16> to vector<16x512xf32>
      %c0_8 = arith.constant 0 : index
      %c0_9 = arith.constant 0 : index
      %10 = vector.load %arg4[%c0_8, %c0_9] : memref<512x32xbf16, #tpu.memory_space<vmem>>, vector<512x32xbf16>
      %cst_10 = arith.constant dense<0.000000e+00> : vector<16x32xf32>
      %11 = tpu.matmul %8, %10, %cst_10 {dimension_numbers = #tpu.dot_dimension_numbers<[1], [0], [0], [1], [0, 0, 1, 1], [], []>} : vector<16x512xbf16>, vector<512x32xbf16>, vector<16x32xf32> -> vector<16x32xf32>
      %c0_11 = arith.constant 0 : index
      %c0_12 = arith.constant 0 : index
      %12 = vector.load %arg5[%c0_11, %c0_12] : memref<1x32xf32, #tpu.memory_space<vmem>>, vector<1x32xf32>
      %13 = vector.broadcast %12 : vector<1x32xf32> to vector<16x32xf32>
      %14 = arith.addf %11, %13 : vector<16x32xf32>
      %cst_13 = arith.constant 0.000000e+00 : f32
      %15 = vector.broadcast %cst_13 : f32 to vector<16x32xf32>
      %16 = arith.maximumf %14, %15 : vector<16x32xf32>
      %17 = arith.truncf %16 : vector<16x32xf32> to vector<16x32xbf16>
      %c0_14 = arith.constant 0 : index
      %c0_15 = arith.constant 0 : index
      %18 = vector.load %arg6[%c0_14, %c0_15] : memref<32x512xbf16, #tpu.memory_space<vmem>>, vector<32x512xbf16>
      %cst_16 = arith.constant dense<0.000000e+00> : vector<16x512xf32>
      %19 = tpu.matmul %17, %18, %cst_16 {dimension_numbers = #tpu.dot_dimension_numbers<[1], [0], [0], [1], [0, 0, 1, 1], [], []>} : vector<16x32xbf16>, vector<32x512xbf16>, vector<16x512xf32> -> vector<16x512xf32>
      %c0_17 = arith.constant 0 : index
      %c0_18 = arith.constant 0 : index
      %20 = vector.load %arg7[%c0_17, %c0_18] : memref<1x512xf32, #tpu.memory_space<vmem>>, vector<1x512xf32>
      %21 = vector.broadcast %20 : vector<1x512xf32> to vector<16x512xf32>
      %22 = arith.addf %19, %21 : vector<16x512xf32>
      %cst_19 = arith.constant 1.000000e+00 : f32
      %23 = vector.broadcast %cst_19 : f32 to vector<16x512xf32>
      %24 = arith.mulf %23, %22 : vector<16x512xf32>
      %cst_20 = arith.constant 1.000000e+00 : f32
      %25 = vector.broadcast %cst_20 : f32 to vector<16x512xf32>
      %26 = arith.mulf %25, %9 : vector<16x512xf32>
      %27 = arith.addf %24, %26 : vector<16x512xf32>
      %28 = arith.mulf %27, %27 : vector<16x512xf32>
      %cst_21 = arith.constant dense<0.000000e+00> : vector<16xf32>
      %29 = vector.multi_reduction <add>, %28, %cst_21 [1] : vector<16x512xf32> to vector<16xf32>
      %30 = vector.shape_cast %29 : vector<16xf32> to vector<16x1xf32>
      %cst_22 = arith.constant 9.99999996E-13 : f32
      %31 = vector.broadcast %cst_22 : f32 to vector<16x1xf32>
      %32 = arith.addf %30, %31 : vector<16x1xf32>
      %33 = math.rsqrt %32 : vector<16x1xf32>
      %34 = vector.broadcast %33 : vector<16x1xf32> to vector<16x512xf32>
      %35 = arith.mulf %27, %34 : vector<16x512xf32>
      %36 = arith.truncf %35 : vector<16x512xf32> to vector<16x512xbf16>
      %c0_23 = arith.constant 0 : index
      %c0_24 = arith.constant 0 : index
      %37 = vector.load %arg9[%c0_23, %c0_24] : memref<16x512xbf16, #tpu.memory_space<vmem>>, vector<16x512xbf16>
      tpu.vector_store %arg9[%c0_23, %c0_24], %36 {strides = array<i32>} : memref<16x512xbf16, #tpu.memory_space<vmem>>, vector<16x512xbf16>,
    } else {
    }
    %c0 = arith.constant 0 : index
    %c0_1 = arith.constant 0 : index
    %3 = vector.load %arg9[%c0, %c0_1] : memref<16x512xbf16, #tpu.memory_space<vmem>>, vector<16x512xbf16>
    %c0_2 = arith.constant 0 : index
    %c0_3 = arith.constant 0 : index
    %4 = vector.load %arg3[%c0_2, %c0_3] : memref<512x128xbf16, #tpu.memory_space<vmem>>, vector<512x128xbf16>
    %cst = arith.constant dense<0.000000e+00> : vector<16x128xf32>
    %5 = tpu.matmul %3, %4, %cst {dimension_numbers = #tpu.dot_dimension_numbers<[1], [0], [0], [1], [0, 0, 1, 1], [], []>} : vector<16x512xbf16>, vector<512x128xbf16>, vector<16x128xf32> -> vector<16x128xf32>
    %6 = arith.truncf %5 : vector<16x128xf32> to vector<16x128xbf16>
    %c0_4 = arith.constant 0 : index
    %c0_5 = arith.constant 0 : index
    %7 = vector.load %arg8[%c0_4, %c0_5] : memref<16x128xbf16, #tpu.memory_space<vmem>>, vector<16x128xbf16>
    tpu.vector_store %arg8[%c0_4, %c0_5], %6 {strides = array<i32>} : memref<16x128xbf16, #tpu.memory_space<vmem>>, vector<16x128xbf16>,
    return
  }
  func.func @transform_0(%arg0: i32, %arg1: i32) -> (i32, i32) {
    %c0_i32 = arith.constant 0 : i32
    %c0_i32_0 = arith.constant 0 : i32
    return %arg0, %c0_i32 : i32, i32
  }
  func.func @transform_1(%arg0: i32, %arg1: i32) -> (i32, i32) {
    %c0_i32 = arith.constant 0 : i32
    %c0_i32_0 = arith.constant 0 : i32
    return %c0_i32, %arg1 : i32, i32
  }
  func.func @transform_2(%arg0: i32, %arg1: i32) -> (i32, i32) {
    %c0_i32 = arith.constant 0 : i32
    %c0_i32_0 = arith.constant 0 : i32
    %c0_i32_1 = arith.constant 0 : i32
    return %c0_i32, %c0_i32_0 : i32, i32
  }
  func.func @transform_3(%arg0: i32, %arg1: i32) -> (i32, i32) {
    %c0_i32 = arith.constant 0 : i32
    %c0_i32_0 = arith.constant 0 : i32
    %c0_i32_1 = arith.constant 0 : i32
    return %c0_i32, %c0_i32_0 : i32, i32
  }
  func.func @transform_4(%arg0: i32, %arg1: i32) -> (i32, i32) {
    %c0_i32 = arith.constant 0 : i32
    %c0_i32_0 = arith.constant 0 : i32
    %c0_i32_1 = arith.constant 0 : i32
    return %c0_i32, %c0_i32_0 : i32, i32
  }
  func.func @transform_5(%arg0: i32, %arg1: i32) -> (i32, i32) {
    %c0_i32 = arith.constant 0 : i32
    %c0_i32_0 = arith.constant 0 : i32
    %c0_i32_1 = arith.constant 0 : i32
    return %c0_i32, %c0_i32_0 : i32, i32
  }
  func.func @transform_6(%arg0: i32, %arg1: i32) -> (i32, i32) {
    %c0_i32 = arith.constant 0 : i32
    return %arg0, %arg1 : i32, i32
  }
  func.func @transform_7(%arg0: i32, %arg1: i32) -> (i32, i32) {
    %c0_i32 = arith.constant 0 : i32
    %c0_i32_0 = arith.constant 0 : i32
    return %arg0, %c0_i32 : i32, i32
  }
}

</mosaic_0001>

<llo_original>
// kernel: tpu_custom_call.1
$region0: #{tpu_custom_call.1}
  #allocation0 [shape = 'u32[]', space=smem, size = 0x4, offset = 0x4, fixed_abs, tag = 'smem constant byte address 0x4 - core index']
  #allocation1 [shape = 'u32[72,128]{1,0:T(1,128)}', space=vmem, size = 0x9000, scoped, tag = 'internal scratch']
  %s0 = inlined_call_operand.hbm [shape: bf16[16,512], index: 0, kind: input, shape index: {}]
  %s1 = inlined_call_operand.vmem [shape: bf16[512,128], index: 1, kind: input, shape index: {}]
  %s2 = inlined_call_operand.vmem [shape: bf16[512,32], index: 2, kind: input, shape index: {}]
  %s3 = inlined_call_operand.hbm [shape: f32[1,32], index: 3, kind: input, shape index: {}]
  %s4 = inlined_call_operand.vmem [shape: bf16[32,512], index: 4, kind: input, shape index: {}]
  %s5 = inlined_call_operand.hbm [shape: f32[1,512], index: 5, kind: input, shape index: {}]
  %s6 = inlined_call_operand.hbm [shape: bf16[16,128], index: 6, kind: output, shape index: {0}]
  %s7 = inlined_call_operand.hbm [shape: bf16[16,512], index: 7, kind: output, shape index: {1}]
  %8 = xla_tuple %s6, %s7
  %s9 = sld [smem:[#allocation0]]
  $region58: #{tpu_custom_call.1} parent=0
    _
  %s11 = ssub.s32 1, %s9
  %s12 = scalar_select 0, %s11, %s9
  $region1: #{tpu_custom_call.1} parent=0
    #allocation2 [shape = 'u8[16384]{0}', space=vmem, size = 0x4000, scoped, tag = 'input window, operand 0, single buffered']
    #allocation3 [shape = 's32[1]{0}', space=sflag, size = 0x4, scoped, tag = 'scoped memory for tpu_custom_call.1']
    #allocation4 [shape = 's32[1]{0}', space=sflag, size = 0x4, scoped, tag = 'scoped memory for tpu_custom_call.1']
    #allocation5 [shape = 'u8[512]{0}', space=vmem, size = 0x400, scoped, tag = 'input window, operand 3, single buffered']
    #allocation6 [shape = 's32[1]{0}', space=sflag, size = 0x4, scoped, tag = 'scoped memory for tpu_custom_call.1']
    #allocation7 [shape = 'u8[2048]{0}', space=vmem, size = 0x800, scoped, tag = 'input window, operand 5, single buffered']
    #allocation8 [shape = 'u8[4096]{0}', space=vmem, size = 0x1000, scoped, tag = 'output window, operand 0, single buffered']
    #allocation9 [shape = 'u8[16384]{0}', space=vmem, size = 0x4000, scoped, tag = 'output window, operand 1, single buffered']
    #allocation10 [shape = 's32[1]{0}', space=sflag, size = 0x4, scoped, tag = 'scoped memory for tpu_custom_call.1']
    %13 = vsyncpa [#allocation3], 0
    %14 = vsyncpa [#allocation6], 0
    %15 = vsyncpa [#allocation4], 0
    %16 = vsyncpa [#allocation10], 0
    // Predicated region
    $region2: #{tpu_custom_call.1} parent=1 // pred_check
      _
    $region3: #{tpu_custom_call.1} parent=1 // pred_check_branch
      %18 = sbr.rel (0) target = $region5
    $region4: #{tpu_custom_call.1} parent=1 // pred_region
      %20 = vsyncadd [#allocation3], 0
      %s21 = sshll.u32 %s0, 4
      %s22 = int_to_ptr.hbm [resolvable:$true] %s21
      %s23 = sshll.u32 [#allocation2], 4
      %s24 = int_to_ptr.vmem [resolvable:$true] %s23
      %29 = dma.hbm_to_vmem [thread:$0]  %s22, 512, %s24, [#allocation3], 256, 256, 16
    $region5: #{tpu_custom_call.1} parent=1 // pred_fallthru
      _
    // Predicated region
    $region6: #{tpu_custom_call.1} parent=1 // pred_check
      _
    $region7: #{tpu_custom_call.1} parent=1 // pred_check_branch
      %31 = sbr.rel (0) target = $region9
    $region8: #{tpu_custom_call.1} parent=1 // pred_region
      _
    $region9: #{tpu_custom_call.1} parent=1 // pred_fallthru
      _
    // Predicated region
    $region10: #{tpu_custom_call.1} parent=1 // pred_check
      _
    $region11: #{tpu_custom_call.1} parent=1 // pred_check_branch
      %33 = sbr.rel (0) target = $region13
    $region12: #{tpu_custom_call.1} parent=1 // pred_region
      _
    $region13: #{tpu_custom_call.1} parent=1 // pred_fallthru
      _
    // Predicated region
    $region14: #{tpu_custom_call.1} parent=1 // pred_check
      _
    $region15: #{tpu_custom_call.1} parent=1 // pred_check_branch
      %35 = sbr.rel (0) target = $region17
    $region16: #{tpu_custom_call.1} parent=1 // pred_region
      %37 = vsyncadd [#allocation6], 0
      %s39 = sshll.u32 %s3, 4
      %s40 = int_to_ptr.hbm [resolvable:$true] %s39
      %s41 = sshll.u32 [#allocation5], 4
      %s42 = int_to_ptr.vmem [resolvable:$true] %s41
      %44 = dma.hbm_to_vmem [thread:$0]  %s40, 16, %s42, [#allocation6]
    $region17: #{tpu_custom_call.1} parent=1 // pred_fallthru
      _
    // Predicated region
    $region18: #{tpu_custom_call.1} parent=1 // pred_check
      _
    $region19: #{tpu_custom_call.1} parent=1 // pred_check_branch
      %46 = sbr.rel (0) target = $region21
    $region20: #{tpu_custom_call.1} parent=1 // pred_region
      _
    $region21: #{tpu_custom_call.1} parent=1 // pred_fallthru
      _
    // Predicated region
    $region22: #{tpu_custom_call.1} parent=1 // pred_check
      _
    $region23: #{tpu_custom_call.1} parent=1 // pred_check_branch
      %48 = sbr.rel (0) target = $region25
    $region24: #{tpu_custom_call.1} parent=1 // pred_region
      %50 = vsyncadd [#allocation6], 0
      %s52 = sshll.u32 %s5, 4
      %s53 = int_to_ptr.hbm [resolvable:$true] %s52
      %s54 = sshll.u32 [#allocation7], 4
      %s55 = int_to_ptr.vmem [resolvable:$true] %s54
      %57 = dma.hbm_to_vmem [thread:$0]  %s53, 64, %s55, [#allocation6]
    $region25: #{tpu_custom_call.1} parent=1 // pred_fallthru
      _
    // Predicated region
    $region26: #{tpu_custom_call.1} parent=1 // pred_check
      _
    $region27: #{tpu_custom_call.1} parent=1 // pred_check_branch
      %59 = sbr.rel (0) target = $region29
    $region28: #{tpu_custom_call.1} parent=1 // pred_region
      %61 = dma.done [#allocation3], 512
    $region29: #{tpu_custom_call.1} parent=1 // pred_fallthru
      _
    // Predicated region
    $region30: #{tpu_custom_call.1} parent=1 // pred_check
      _
    $region31: #{tpu_custom_call.1} parent=1 // pred_check_branch
      %63 = sbr.rel (0) target = $region33
    $region32: #{tpu_custom_call.1} parent=1 // pred_region
      %65 = dma.done [#allocation6], 16
    $region33: #{tpu_custom_call.1} parent=1 // pred_fallthru
      _
    // Predicated region
    $region34: #{tpu_custom_call.1} parent=1 // pred_check
      _
    $region35: #{tpu_custom_call.1} parent=1 // pred_check_branch
      %67 = sbr.rel (0) target = $region37
    $region36: #{tpu_custom_call.1} parent=1 // pred_region
      %69 = dma.done [#allocation6], 64
    $region37: #{tpu_custom_call.1} parent=1 // pred_fallthru
      _
    %p71 = scmp.eq.s32.totalorder 0, 0
    // Predicated region
    $region38: #{tpu_custom_call.1} parent=1 // pred_check
      %p72 = pneg %p71
    $region39: #{tpu_custom_call.1} parent=1 // pred_check_branch
      %74 = sbr.rel (%p72) target = $region41
    $region40: #{tpu_custom_call.1} parent=1 // pred_region
      %v75 = vld [vmem:[#allocation2] sm:$0xff]
      %v76 = vld [vmem:[#allocation2 + $0x8] sm:$0xff]
      %v77 = vld [vmem:[#allocation2 + $0x10] sm:$0xff]
      %v78 = vld [vmem:[#allocation2 + $0x18] sm:$0xff]
      %v79 = vunpack.c.l.bf16 %v75
      %v80 = vunpack.c.h.bf16 %v75
      %v81 = vunpack.c.l.bf16 %v76
      %v82 = vunpack.c.h.bf16 %v76
      %v83 = vunpack.c.l.bf16 %v77
      %v84 = vunpack.c.h.bf16 %v77
      %v85 = vunpack.c.l.bf16 %v78
      %v86 = vunpack.c.h.bf16 %v78
      %v87 = vld [vmem:[%s2] sm:$0xf]
      %v88 = vld [vmem:[%s2 + $0x4] sm:$0xf]
      %v89 = vld [vmem:[%s2 + $0x8] sm:$0xf]
      %v90 = vld [vmem:[%s2 + $0xc] sm:$0xf]
      %v91 = vld [vmem:[%s2 + $0x10] sm:$0xf]
      %v92 = vld [vmem:[%s2 + $0x14] sm:$0xf]
      %v93 = vld [vmem:[%s2 + $0x18] sm:$0xf]
      %v94 = vld [vmem:[%s2 + $0x1c] sm:$0xf]
      %v95 = vld [vmem:[%s2 + $0x20] sm:$0xf]
      %v96 = vld [vmem:[%s2 + $0x24] sm:$0xf]
      %v97 = vld [vmem:[%s2 + $0x28] sm:$0xf]
      %v98 = vld [vmem:[%s2 + $0x2c] sm:$0xf]
      %v99 = vld [vmem:[%s2 + $0x30] sm:$0xf]
      %v100 = vld [vmem:[%s2 + $0x34] sm:$0xf]
      %v101 = vld [vmem:[%s2 + $0x38] sm:$0xf]
      %v102 = vld [vmem:[%s2 + $0x3c] sm:$0xf]
      %v103 = vld [vmem:[%s2 + $0x40] sm:$0xf]
      %v104 = vld [vmem:[%s2 + $0x44] sm:$0xf]
      %v105 = vld [vmem:[%s2 + $0x48] sm:$0xf]
      %v106 = vld [vmem:[%s2 + $0x4c] sm:$0xf]
      %v107 = vld [vmem:[%s2 + $0x50] sm:$0xf]
      %v108 = vld [vmem:[%s2 + $0x54] sm:$0xf]
      %v109 = vld [vmem:[%s2 + $0x58] sm:$0xf]
      %v110 = vld [vmem:[%s2 + $0x5c] sm:$0xf]
      %v111 = vld [vmem:[%s2 + $0x60] sm:$0xf]
      %v112 = vld [vmem:[%s2 + $0x64] sm:$0xf]
      %v113 = vld [vmem:[%s2 + $0x68] sm:$0xf]
      %v114 = vld [vmem:[%s2 + $0x6c] sm:$0xf]
      %v115 = vld [vmem:[%s2 + $0x70] sm:$0xf]
      %v116 = vld [vmem:[%s2 + $0x74] sm:$0xf]
      %v117 = vld [vmem:[%s2 + $0x78] sm:$0xf]
      %v118 = vld [vmem:[%s2 + $0x7c] sm:$0xf]
      %v119 = vld [vmem:[%s2 + $0x80] sm:$0xf]
      %v120 = vld [vmem:[%s2 + $0x84] sm:$0xf]
      %v121 = vld [vmem:[%s2 + $0x88] sm:$0xf]
      %v122 = vld [vmem:[%s2 + $0x8c] sm:$0xf]
      %v123 = vld [vmem:[%s2 + $0x90] sm:$0xf]
      %v124 = vld [vmem:[%s2 + $0x94] sm:$0xf]
      %v125 = vld [vmem:[%s2 + $0x98] sm:$0xf]
      %v126 = vld [vmem:[%s2 + $0x9c] sm:$0xf]
      %v127 = vld [vmem:[%s2 + $0xa0] sm:$0xf]
      %v128 = vld [vmem:[%s2 + $0xa4] sm:$0xf]
      %v129 = vld [vmem:[%s2 + $0xa8] sm:$0xf]
      %v130 = vld [vmem:[%s2 + $0xac] sm:$0xf]
      %v131 = vld [vmem:[%s2 + $0xb0] sm:$0xf]
      %v132 = vld [vmem:[%s2 + $0xb4] sm:$0xf]
      %v133 = vld [vmem:[%s2 + $0xb8] sm:$0xf]
      %v134 = vld [vmem:[%s2 + $0xbc] sm:$0xf]
      %v135 = vld [vmem:[%s2 + $0xc0] sm:$0xf]
      %v136 = vld [vmem:[%s2 + $0xc4] sm:$0xf]
      %v137 = vld [vmem:[%s2 + $0xc8] sm:$0xf]
      %v138 = vld [vmem:[%s2 + $0xcc] sm:$0xf]
      %v139 = vld [vmem:[%s2 + $0xd0] sm:$0xf]
      %v140 = vld [vmem:[%s2 + $0xd4] sm:$0xf]
      %v141 = vld [vmem:[%s2 + $0xd8] sm:$0xf]
      %v142 = vld [vmem:[%s2 + $0xdc] sm:$0xf]
      %v143 = vld [vmem:[%s2 + $0xe0] sm:$0xf]
      %v144 = vld [vmem:[%s2 + $0xe4] sm:$0xf]
      %v145 = vld [vmem:[%s2 + $0xe8] sm:$0xf]
      %v146 = vld [vmem:[%s2 + $0xec] sm:$0xf]
      %v147 = vld [vmem:[%s2 + $0xf0] sm:$0xf]
      %v148 = vld [vmem:[%s2 + $0xf4] sm:$0xf]
      %v149 = vld [vmem:[%s2 + $0xf8] sm:$0xf]
      %v150 = vld [vmem:[%s2 + $0xfc] sm:$0xf]
      %v151 = vld [vmem:[#allocation5] sm:$0x1]
      %v153 = vperm.slane %v151, 0
      %v159 = vunpack.c.l.b16 %v75
      %v160 = vunpack.c.h.b16 %v75
      %v161 = vunpack.c.l.b16 %v76
      %v162 = vunpack.c.h.b16 %v76
      %v163 = vunpack.c.l.b16 %v77
      %v164 = vunpack.c.h.b16 %v77
      %v165 = vunpack.c.l.b16 %v78
      %v166 = vunpack.c.h.b16 %v78
      %v167 = vpack.c.b16 %v163, %v159
      %v168 = vpack.c.b16 %v164, %v160
      %v169 = vpack.c.b16 %v165, %v161
      %v170 = vpack.c.b16 %v166, %v162
      %v239 = vunpack.c.l.b16 %v87
      %v240 = vunpack.c.l.b16 %v88
      %v241 = vunpack.c.l.b16 %v89
      %v242 = vunpack.c.l.b16 %v90
      %v243 = vunpack.c.l.b16 %v91
      %v244 = vunpack.c.l.b16 %v92
      %v245 = vunpack.c.l.b16 %v93
      %v246 = vunpack.c.l.b16 %v94
      %v247 = vunpack.c.l.b16 %v95
      %v248 = vunpack.c.l.b16 %v96
      %v249 = vunpack.c.l.b16 %v97
      %v250 = vunpack.c.l.b16 %v98
      %v251 = vunpack.c.l.b16 %v99
      %v252 = vunpack.c.l.b16 %v100
      %v253 = vunpack.c.l.b16 %v101
      %v254 = vunpack.c.l.b16 %v102
      %v255 = vunpack.c.l.b16 %v103
      %v256 = vunpack.c.l.b16 %v104
      %v257 = vunpack.c.l.b16 %v105
      %v258 = vunpack.c.l.b16 %v106
      %v259 = vunpack.c.l.b16 %v107
      %v260 = vunpack.c.l.b16 %v108
      %v261 = vunpack.c.l.b16 %v109
      %v262 = vunpack.c.l.b16 %v110
      %v263 = vunpack.c.l.b16 %v111
      %v264 = vunpack.c.l.b16 %v112
      %v265 = vunpack.c.l.b16 %v113
      %v266 = vunpack.c.l.b16 %v114
      %v267 = vunpack.c.l.b16 %v115
      %v268 = vunpack.c.l.b16 %v116
      %v269 = vunpack.c.l.b16 %v117
      %v270 = vunpack.c.l.b16 %v118
      %v271 = vunpack.c.l.b16 %v119
      %v272 = vunpack.c.l.b16 %v120
      %v273 = vunpack.c.l.b16 %v121
      %v274 = vunpack.c.l.b16 %v122
      %v275 = vunpack.c.l.b16 %v123
      %v276 = vunpack.c.l.b16 %v124
      %v277 = vunpack.c.l.b16 %v125
      %v278 = vunpack.c.l.b16 %v126
      %v279 = vunpack.c.l.b16 %v127
      %v280 = vunpack.c.l.b16 %v128
      %v281 = vunpack.c.l.b16 %v129
      %v282 = vunpack.c.l.b16 %v130
      %v283 = vunpack.c.l.b16 %v131
      %v284 = vunpack.c.l.b16 %v132
      %v285 = vunpack.c.l.b16 %v133
      %v286 = vunpack.c.l.b16 %v134
      %v287 = vunpack.c.l.b16 %v135
      %v288 = vunpack.c.l.b16 %v136
      %v289 = vunpack.c.l.b16 %v137
      %v290 = vunpack.c.l.b16 %v138
      %v291 = vunpack.c.l.b16 %v139
      %v292 = vunpack.c.l.b16 %v140
      %v293 = vunpack.c.l.b16 %v141
      %v294 = vunpack.c.l.b16 %v142
      %v295 = vunpack.c.l.b16 %v143
      %v296 = vunpack.c.l.b16 %v144
      %v297 = vunpack.c.l.b16 %v145
      %v298 = vunpack.c.l.b16 %v146
      %v299 = vunpack.c.l.b16 %v147
      %v300 = vunpack.c.l.b16 %v148
      %v301 = vunpack.c.l.b16 %v149
      %v302 = vunpack.c.l.b16 %v150
      %v303 = vpack.c.b16 %v240, %v239
      %v304 = vpack.c.b16 %v242, %v241
      %v305 = vpack.c.b16 %v244, %v243
      %v306 = vpack.c.b16 %v246, %v245
      %v307 = vpack.c.b16 %v248, %v247
      %v308 = vpack.c.b16 %v250, %v249
      %v309 = vpack.c.b16 %v252, %v251
      %v310 = vpack.c.b16 %v254, %v253
      %v311 = vpack.c.b16 %v256, %v255
      %v312 = vpack.c.b16 %v258, %v257
      %v313 = vpack.c.b16 %v260, %v259
      %v314 = vpack.c.b16 %v262, %v261
      %v315 = vpack.c.b16 %v264, %v263
      %v316 = vpack.c.b16 %v266, %v265
      %v317 = vpack.c.b16 %v268, %v267
      %v318 = vpack.c.b16 %v270, %v269
      %v319 = vpack.c.b16 %v272, %v271
      %v320 = vpack.c.b16 %v274, %v273
      %v321 = vpack.c.b16 %v276, %v275
      %v322 = vpack.c.b16 %v278, %v277
      %v323 = vpack.c.b16 %v280, %v279
      %v324 = vpack.c.b16 %v282, %v281
      %v325 = vpack.c.b16 %v284, %v283
      %v326 = vpack.c.b16 %v286, %v285
      %v327 = vpack.c.b16 %v288, %v287
      %v328 = vpack.c.b16 %v290, %v289
      %v329 = vpack.c.b16 %v292, %v291
      %v330 = vpack.c.b16 %v294, %v293
      %v331 = vpack.c.b16 %v296, %v295
      %v332 = vpack.c.b16 %v298, %v297
      %v333 = vpack.c.b16 %v300, %v299
      %v334 = vpack.c.b16 %v302, %v301
      %367 = vmatpush.bf16.msra.mxu0 %v310
      %368 = vmatpush.bf16.msra.mxu0 %v309
      %369 = vmatpush.bf16.msra.mxu0 %v308
      %370 = vmatpush.bf16.msra.mxu0 %v307
      %371 = vmatpush.bf16.msra.mxu0 %v306
      %372 = vmatpush.bf16.msra.mxu0 %v305
      %373 = vmatpush.bf16.msra.mxu0 %v304
      %374 = vmatpush.bf16.msra.mxu0 %v303
      %375 = vmatmul.bf16.gmra.mxu0 %v167
      %v376 = vpop.f32.mrf.mxu0
      %v377 = vadd.f32 %v153, %v376
      %v378 = vpop.f32.mrf.mxu0
      %v379 = vadd.f32 %v153, %v378
      %380 = vdwg.mxu0
      %381 = vmatpush.bf16.msra.mxu0 %v318
      %382 = vmatpush.bf16.msra.mxu0 %v317
      %383 = vmatpush.bf16.msra.mxu0 %v316
      %384 = vmatpush.bf16.msra.mxu0 %v315
      %385 = vmatpush.bf16.msra.mxu0 %v314
      %386 = vmatpush.bf16.msra.mxu0 %v313
      %387 = vmatpush.bf16.msra.mxu0 %v312
      %388 = vmatpush.bf16.msra.mxu0 %v311
      %389 = vmatmul.bf16.gmra.mxu0 %v168
      %v390 = vpop.f32.mrf.mxu0
      %v391 = vadd.f32 %v377, %v390
      %v392 = vpop.f32.mrf.mxu0
      %v393 = vadd.f32 %v379, %v392
      %394 = vdwg.mxu0
      %395 = vmatpush.bf16.msra.mxu0 %v326
      %396 = vmatpush.bf16.msra.mxu0 %v325
      %397 = vmatpush.bf16.msra.mxu0 %v324
      %398 = vmatpush.bf16.msra.mxu0 %v323
      %399 = vmatpush.bf16.msra.mxu0 %v322
      %400 = vmatpush.bf16.msra.mxu0 %v321
      %401 = vmatpush.bf16.msra.mxu0 %v320
      %402 = vmatpush.bf16.msra.mxu0 %v319
      %403 = vmatmul.bf16.gmra.mxu0 %v169
      %v404 = vpop.f32.mrf.mxu0
      %v405 = vadd.f32 %v391, %v404
      %v406 = vpop.f32.mrf.mxu0
      %v407 = vadd.f32 %v393, %v406
      %408 = vdwg.mxu0
      %409 = vmatpush.bf16.msra.mxu0 %v334
      %410 = vmatpush.bf16.msra.mxu0 %v333
      %411 = vmatpush.bf16.msra.mxu0 %v332
      %412 = vmatpush.bf16.msra.mxu0 %v331
      %413 = vmatpush.bf16.msra.mxu0 %v330
      %414 = vmatpush.bf16.msra.mxu0 %v329
      %415 = vmatpush.bf16.msra.mxu0 %v328
      %416 = vmatpush.bf16.msra.mxu0 %v327
      %417 = vmatmul.bf16.gmra.mxu0 %v170
      %v418 = vpop.f32.mrf.mxu0
      %v419 = vadd.f32 %v405, %v418
      %v420 = vpop.f32.mrf.mxu0
      %v421 = vadd.f32 %v407, %v420
      %422 = vdwg.mxu0
      %v423 = vmax.f32 %v419, 0.0
      %v424 = vmax.f32 %v421, 0.0
      %v425 = vpack.c.bf16 %v424, %v423
      %v426 = vld [vmem:[%s4] sm:$0xff]
      %v427 = vld [vmem:[%s4 + $0x8] sm:$0xff]
      %v428 = vld [vmem:[%s4 + $0x10] sm:$0xff]
      %v429 = vld [vmem:[%s4 + $0x18] sm:$0xff]
      %v430 = vld [vmem:[%s4 + $0x20] sm:$0xff]
      %v431 = vld [vmem:[%s4 + $0x28] sm:$0xff]
      %v432 = vld [vmem:[%s4 + $0x30] sm:$0xff]
      %v433 = vld [vmem:[%s4 + $0x38] sm:$0xff]
      %v434 = vld [vmem:[#allocation7] sm:$0xf]
      %v436 = vperm.slane %v434, 0
      %v437 = vperm.slane %v434, 1
      %v438 = vperm.slane %v434, 2
      %v439 = vperm.slane %v434, 3
      %v452 = vunpack.c.l.b16 %v426
      %v453 = vunpack.c.h.b16 %v426
      %v454 = vunpack.c.l.b16 %v427
      %v455 = vunpack.c.h.b16 %v427
      %v456 = vunpack.c.l.b16 %v428
      %v457 = vunpack.c.h.b16 %v428
      %v458 = vunpack.c.l.b16 %v429
      %v459 = vunpack.c.h.b16 %v429
      %v460 = vunpack.c.l.b16 %v430
      %v461 = vunpack.c.h.b16 %v430
      %v462 = vunpack.c.l.b16 %v431
      %v463 = vunpack.c.h.b16 %v431
      %v464 = vunpack.c.l.b16 %v432
      %v465 = vunpack.c.h.b16 %v432
      %v466 = vunpack.c.l.b16 %v433
      %v467 = vunpack.c.h.b16 %v433
      %v468 = vpack.c.b16 %v456, %v452
      %v469 = vpack.c.b16 %v457, %v453
      %v470 = vpack.c.b16 %v458, %v454
      %v471 = vpack.c.b16 %v459, %v455
      %v472 = vpack.c.b16 %v464, %v460
      %v473 = vpack.c.b16 %v465, %v461
      %v474 = vpack.c.b16 %v466, %v462
      %v475 = vpack.c.b16 %v467, %v463
      %vm484 = vcmask 261120
      %v486 = vsel %vm484, %v425, 0
      %488 = vmatpush.bf16.msra.mxu0 0
      %489 = vmatpush.bf16.msra.mxu0 0
      %490 = vmatpush.bf16.msra.mxu0 0
      %491 = vmatpush.bf16.msra.mxu0 0
      %492 = vmatpush.bf16.msra.mxu0 0
      %493 = vmatpush.bf16.msra.mxu0 0
      %494 = vmatpush.bf16.msra.mxu0 %v472
      %495 = vmatpush.bf16.msra.mxu0 %v468
      %496 = vmatmul.bf16.gmra.mxu0 %v486
      %v497 = vpop.f32.mrf.mxu0
      %v498 = vadd.f32 %v436, %v497
      %v499 = vpop.f32.mrf.mxu0
      %v500 = vadd.f32 %v436, %v499
      %501 = vdwg.mxu0
      %502 = vmatpush.bf16.msra.mxu0 0
      %503 = vmatpush.bf16.msra.mxu0 0
      %504 = vmatpush.bf16.msra.mxu0 0
      %505 = vmatpush.bf16.msra.mxu0 0
      %506 = vmatpush.bf16.msra.mxu0 0
      %507 = vmatpush.bf16.msra.mxu0 0
      %508 = vmatpush.bf16.msra.mxu0 %v473
      %509 = vmatpush.bf16.msra.mxu0 %v469
      %510 = vmatmul.bf16.gmra.mxu0 %v486
      %v511 = vpop.f32.mrf.mxu0
      %v512 = vadd.f32 %v437, %v511
      %v513 = vpop.f32.mrf.mxu0
      %v514 = vadd.f32 %v437, %v513
      %515 = vdwg.mxu0
      %516 = vmatpush.bf16.msra.mxu0 0
      %517 = vmatpush.bf16.msra.mxu0 0
      %518 = vmatpush.bf16.msra.mxu0 0
      %519 = vmatpush.bf16.msra.mxu0 0
      %520 = vmatpush.bf16.msra.mxu0 0
      %521 = vmatpush.bf16.msra.mxu0 0
      %522 = vmatpush.bf16.msra.mxu0 %v474
      %523 = vmatpush.bf16.msra.mxu0 %v470
      %524 = vmatmul.bf16.gmra.mxu0 %v486
      %v525 = vpop.f32.mrf.mxu0
      %v526 = vadd.f32 %v438, %v525
      %v527 = vpop.f32.mrf.mxu0
      %v528 = vadd.f32 %v438, %v527
      %529 = vdwg.mxu0
      %530 = vmatpush.bf16.msra.mxu0 0
      %531 = vmatpush.bf16.msra.mxu0 0
      %532 = vmatpush.bf16.msra.mxu0 0
      %533 = vmatpush.bf16.msra.mxu0 0
      %534 = vmatpush.bf16.msra.mxu0 0
      %535 = vmatpush.bf16.msra.mxu0 0
      %536 = vmatpush.bf16.msra.mxu0 %v475
      %537 = vmatpush.bf16.msra.mxu0 %v471
      %538 = vmatmul.bf16.gmra.mxu0 %v486
      %v539 = vpop.f32.mrf.mxu0
      %v540 = vadd.f32 %v439, %v539
      %v541 = vpop.f32.mrf.mxu0
      %v542 = vadd.f32 %v439, %v541
      %543 = vdwg.mxu0
      %v544 = vadd.f32 %v498, %v79
      %v545 = vadd.f32 %v512, %v80
      %v546 = vadd.f32 %v526, %v81
      %v547 = vadd.f32 %v540, %v82
      %v548 = vadd.f32 %v500, %v83
      %v549 = vadd.f32 %v514, %v84
      %v550 = vadd.f32 %v528, %v85
      %v551 = vadd.f32 %v542, %v86
      %v552 = vmul.f32 %v544, %v544
      %v553 = vmul.f32 %v545, %v545
      %v554 = vmul.f32 %v546, %v546
      %v555 = vmul.f32 %v547, %v547
      %v556 = vmul.f32 %v548, %v548
      %v557 = vmul.f32 %v549, %v549
      %v558 = vmul.f32 %v550, %v550
      %v559 = vmul.f32 %v551, %v551
      %v560 = vadd.f32 %v552, %v553
      %v561 = vadd.f32 %v560, %v554
      %v562 = vadd.f32 %v561, %v555
      %563 = vadd.xlane.f32.xlu0 %v562
      %v564 = vpop.xlane.xlu0 %563
      %v565 = vadd.f32 %v556, %v557
      %v566 = vadd.f32 %v565, %v558
      %v567 = vadd.f32 %v566, %v559
      %568 = vadd.xlane.f32.xlu0 %v567
      %v569 = vpop.xlane.xlu0 %568
      %v570 = vadd.f32 %v564, 1e-12
      %v571 = vadd.f32 %v569, 1e-12
      %v572 = vrsqrt.pop %v570
      %v573 = vmul.f32 %v572, %v570
      %v574 = vmul.f32 %v573, %v572
      %v575 = vmul.f32 0.5, %v574
      %v576 = vsub.f32 1.5, %v575
      %v577 = vmul.f32 %v572, %v576
      %vm578 = vweird.f32 %v570
      %vm579 = vweird.f32 %v572
      %vm580 = vmor %vm578, %vm579
      %v581 = vsel %vm580, %v572, %v577
      %v582 = vrsqrt.pop %v571
      %v583 = vmul.f32 %v582, %v571
      %v584 = vmul.f32 %v583, %v582
      %v585 = vmul.f32 0.5, %v584
      %v586 = vsub.f32 1.5, %v585
      %v587 = vmul.f32 %v582, %v586
      %vm588 = vweird.f32 %v571
      %vm589 = vweird.f32 %v582
      %vm590 = vmor %vm588, %vm589
      %v591 = vsel %vm590, %v582, %v587
      %v592 = vmul.f32 %v544, %v581
      %v593 = vmul.f32 %v545, %v581
      %v594 = vmul.f32 %v546, %v581
      %v595 = vmul.f32 %v547, %v581
      %v596 = vmul.f32 %v548, %v591
      %v597 = vmul.f32 %v549, %v591
      %v598 = vmul.f32 %v550, %v591
      %v599 = vmul.f32 %v551, %v591
      %v600 = vpack.c.bf16 %v593, %v592
      %v601 = vpack.c.bf16 %v595, %v594
      %v602 = vpack.c.bf16 %v597, %v596
      %v603 = vpack.c.bf16 %v599, %v598
      %604 = vst [vmem:[#allocation9] sm:$0xff] %v600
      %605 = vst [vmem:[#allocation9 + $0x8] sm:$0xff] %v601
      %606 = vst [vmem:[#allocation9 + $0x10] sm:$0xff] %v602
      %607 = vst [vmem:[#allocation9 + $0x18] sm:$0xff] %v603
    $region41: #{tpu_custom_call.1} parent=1 // pred_fallthru
      _
    %v608 = vld [vmem:[#allocation9] sm:$0xff]
    %v609 = vld [vmem:[#allocation9 + $0x8] sm:$0xff]
    %v610 = vld [vmem:[#allocation9 + $0x10] sm:$0xff]
    %v611 = vld [vmem:[#allocation9 + $0x18] sm:$0xff]
    %v612 = vld [vmem:[%s1] sm:$0xf]
    %v613 = vld [vmem:[%s1 + $0x4] sm:$0xf]
    %v614 = vld [vmem:[%s1 + $0x8] sm:$0xf]
    %v615 = vld [vmem:[%s1 + $0xc] sm:$0xf]
    %v616 = vld [vmem:[%s1 + $0x10] sm:$0xf]
    %v617 = vld [vmem:[%s1 + $0x14] sm:$0xf]
    %v618 = vld [vmem:[%s1 + $0x18] sm:$0xf]
    %v619 = vld [vmem:[%s1 + $0x1c] sm:$0xf]
    %v620 = vld [vmem:[%s1 + $0x20] sm:$0xf]
    %v621 = vld [vmem:[%s1 + $0x24] sm:$0xf]
    %v622 = vld [vmem:[%s1 + $0x28] sm:$0xf]
    %v623 = vld [vmem:[%s1 + $0x2c] sm:$0xf]
    %v624 = vld [vmem:[%s1 + $0x30] sm:$0xf]
    %v625 = vld [vmem:[%s1 + $0x34] sm:$0xf]
    %v626 = vld [vmem:[%s1 + $0x38] sm:$0xf]
    %v627 = vld [vmem:[%s1 + $0x3c] sm:$0xf]
    %v628 = vld [vmem:[%s1 + $0x40] sm:$0xf]
    %v629 = vld [vmem:[%s1 + $0x44] sm:$0xf]
    %v630 = vld [vmem:[%s1 + $0x48] sm:$0xf]
    %v631 = vld [vmem:[%s1 + $0x4c] sm:$0xf]
    %v632 = vld [vmem:[%s1 + $0x50] sm:$0xf]
    %v633 = vld [vmem:[%s1 + $0x54] sm:$0xf]
    %v634 = vld [vmem:[%s1 + $0x58] sm:$0xf]
    %v635 = vld [vmem:[%s1 + $0x5c] sm:$0xf]
    %v636 = vld [vmem:[%s1 + $0x60] sm:$0xf]
    %v637 = vld [vmem:[%s1 + $0x64] sm:$0xf]
    %v638 = vld [vmem:[%s1 + $0x68] sm:$0xf]
    %v639 = vld [vmem:[%s1 + $0x6c] sm:$0xf]
    %v640 = vld [vmem:[%s1 + $0x70] sm:$0xf]
    %v641 = vld [vmem:[%s1 + $0x74] sm:$0xf]
    %v642 = vld [vmem:[%s1 + $0x78] sm:$0xf]
    %v643 = vld [vmem:[%s1 + $0x7c] sm:$0xf]
    %v644 = vld [vmem:[%s1 + $0x80] sm:$0xf]
    %v645 = vld [vmem:[%s1 + $0x84] sm:$0xf]
    %v646 = vld [vmem:[%s1 + $0x88] sm:$0xf]
    %v647 = vld [vmem:[%s1 + $0x8c] sm:$0xf]
    %v648 = vld [vmem:[%s1 + $0x90] sm:$0xf]
    %v649 = vld [vmem:[%s1 + $0x94] sm:$0xf]
    %v650 = vld [vmem:[%s1 + $0x98] sm:$0xf]
    %v651 = vld [vmem:[%s1 + $0x9c] sm:$0xf]
    %v652 = vld [vmem:[%s1 + $0xa0] sm:$0xf]
    %v653 = vld [vmem:[%s1 + $0xa4] sm:$0xf]
    %v654 = vld [vmem:[%s1 + $0xa8] sm:$0xf]
    %v655 = vld [vmem:[%s1 + $0xac] sm:$0xf]
    %v656 = vld [vmem:[%s1 + $0xb0] sm:$0xf]
    %v657 = vld [vmem:[%s1 + $0xb4] sm:$0xf]
    %v658 = vld [vmem:[%s1 + $0xb8] sm:$0xf]
    %v659 = vld [vmem:[%s1 + $0xbc] sm:$0xf]
    %v660 = vld [vmem:[%s1 + $0xc0] sm:$0xf]
    %v661 = vld [vmem:[%s1 + $0xc4] sm:$0xf]
    %v662 = vld [vmem:[%s1 + $0xc8] sm:$0xf]
    %v663 = vld [vmem:[%s1 + $0xcc] sm:$0xf]
    %v664 = vld [vmem:[%s1 + $0xd0] sm:$0xf]
    %v665 = vld [vmem:[%s1 + $0xd4] sm:$0xf]
    %v666 = vld [vmem:[%s1 + $0xd8] sm:$0xf]
    %v667 = vld [vmem:[%s1 + $0xdc] sm:$0xf]
    %v668 = vld [vmem:[%s1 + $0xe0] sm:$0xf]
    %v669 = vld [vmem:[%s1 + $0xe4] sm:$0xf]
    %v670 = vld [vmem:[%s1 + $0xe8] sm:$0xf]
    %v671 = vld [vmem:[%s1 + $0xec] sm:$0xf]
    %v672 = vld [vmem:[%s1 + $0xf0] sm:$0xf]
    %v673 = vld [vmem:[%s1 + $0xf4] sm:$0xf]
    %v674 = vld [vmem:[%s1 + $0xf8] sm:$0xf]
    %v675 = vld [vmem:[%s1 + $0xfc] sm:$0xf]
    %v680 = vunpack.c.l.b16 %v608
    %v681 = vunpack.c.h.b16 %v608
    %v682 = vunpack.c.l.b16 %v609
    %v683 = vunpack.c.h.b16 %v609
    %v684 = vunpack.c.l.b16 %v610
    %v685 = vunpack.c.h.b16 %v610
    %v686 = vunpack.c.l.b16 %v611
    %v687 = vunpack.c.h.b16 %v611
    %v688 = vpack.c.b16 %v684, %v680
    %v689 = vpack.c.b16 %v685, %v681
    %v690 = vpack.c.b16 %v686, %v682
    %v691 = vpack.c.b16 %v687, %v683
    %v760 = vunpack.c.l.b16 %v612
    %v761 = vunpack.c.l.b16 %v613
    %v762 = vunpack.c.l.b16 %v614
    %v763 = vunpack.c.l.b16 %v615
    %v764 = vunpack.c.l.b16 %v616
    %v765 = vunpack.c.l.b16 %v617
    %v766 = vunpack.c.l.b16 %v618
    %v767 = vunpack.c.l.b16 %v619
    %v768 = vunpack.c.l.b16 %v620
    %v769 = vunpack.c.l.b16 %v621
    %v770 = vunpack.c.l.b16 %v622
    %v771 = vunpack.c.l.b16 %v623
    %v772 = vunpack.c.l.b16 %v624
    %v773 = vunpack.c.l.b16 %v625
    %v774 = vunpack.c.l.b16 %v626
    %v775 = vunpack.c.l.b16 %v627
    %v776 = vunpack.c.l.b16 %v628
    %v777 = vunpack.c.l.b16 %v629
    %v778 = vunpack.c.l.b16 %v630
    %v779 = vunpack.c.l.b16 %v631
    %v780 = vunpack.c.l.b16 %v632
    %v781 = vunpack.c.l.b16 %v633
    %v782 = vunpack.c.l.b16 %v634
    %v783 = vunpack.c.l.b16 %v635
    %v784 = vunpack.c.l.b16 %v636
    %v785 = vunpack.c.l.b16 %v637
    %v786 = vunpack.c.l.b16 %v638
    %v787 = vunpack.c.l.b16 %v639
    %v788 = vunpack.c.l.b16 %v640
    %v789 = vunpack.c.l.b16 %v641
    %v790 = vunpack.c.l.b16 %v642
    %v791 = vunpack.c.l.b16 %v643
    %v792 = vunpack.c.l.b16 %v644
    %v793 = vunpack.c.l.b16 %v645
    %v794 = vunpack.c.l.b16 %v646
    %v795 = vunpack.c.l.b16 %v647
    %v796 = vunpack.c.l.b16 %v648
    %v797 = vunpack.c.l.b16 %v649
    %v798 = vunpack.c.l.b16 %v650
    %v799 = vunpack.c.l.b16 %v651
    %v800 = vunpack.c.l.b16 %v652
    %v801 = vunpack.c.l.b16 %v653
    %v802 = vunpack.c.l.b16 %v654
    %v803 = vunpack.c.l.b16 %v655
    %v804 = vunpack.c.l.b16 %v656
    %v805 = vunpack.c.l.b16 %v657
    %v806 = vunpack.c.l.b16 %v658
    %v807 = vunpack.c.l.b16 %v659
    %v808 = vunpack.c.l.b16 %v660
    %v809 = vunpack.c.l.b16 %v661
    %v810 = vunpack.c.l.b16 %v662
    %v811 = vunpack.c.l.b16 %v663
    %v812 = vunpack.c.l.b16 %v664
    %v813 = vunpack.c.l.b16 %v665
    %v814 = vunpack.c.l.b16 %v666
    %v815 = vunpack.c.l.b16 %v667
    %v816 = vunpack.c.l.b16 %v668
    %v817 = vunpack.c.l.b16 %v669
    %v818 = vunpack.c.l.b16 %v670
    %v819 = vunpack.c.l.b16 %v671
    %v820 = vunpack.c.l.b16 %v672
    %v821 = vunpack.c.l.b16 %v673
    %v822 = vunpack.c.l.b16 %v674
    %v823 = vunpack.c.l.b16 %v675
    %v824 = vpack.c.b16 %v761, %v760
    %v825 = vpack.c.b16 %v763, %v762
    %v826 = vpack.c.b16 %v765, %v764
    %v827 = vpack.c.b16 %v767, %v766
    %v828 = vpack.c.b16 %v769, %v768
    %v829 = vpack.c.b16 %v771, %v770
    %v830 = vpack.c.b16 %v773, %v772
    %v831 = vpack.c.b16 %v775, %v774
    %v832 = vpack.c.b16 %v777, %v776
    %v833 = vpack.c.b16 %v779, %v778
    %v834 = vpack.c.b16 %v781, %v780
    %v835 = vpack.c.b16 %v783, %v782
    %v836 = vpack.c.b16 %v785, %v784
    %v837 = vpack.c.b16 %v787, %v786
    %v838 = vpack.c.b16 %v789, %v788
    %v839 = vpack.c.b16 %v791, %v790
    %v840 = vpack.c.b16 %v793, %v792
    %v841 = vpack.c.b16 %v795, %v794
    %v842 = vpack.c.b16 %v797, %v796
    %v843 = vpack.c.b16 %v799, %v798
    %v844 = vpack.c.b16 %v801, %v800
    %v845 = vpack.c.b16 %v803, %v802
    %v846 = vpack.c.b16 %v805, %v804
    %v847 = vpack.c.b16 %v807, %v806
    %v848 = vpack.c.b16 %v809, %v808
    %v849 = vpack.c.b16 %v811, %v810
    %v850 = vpack.c.b16 %v813, %v812
    %v851 = vpack.c.b16 %v815, %v814
    %v852 = vpack.c.b16 %v817, %v816
    %v853 = vpack.c.b16 %v819, %v818
    %v854 = vpack.c.b16 %v821, %v820
    %v855 = vpack.c.b16 %v823, %v822
    %888 = vmatpush.bf16.msra.mxu0 %v831
    %889 = vmatpush.bf16.msra.mxu0 %v830
    %890 = vmatpush.bf16.msra.mxu0 %v829
    %891 = vmatpush.bf16.msra.mxu0 %v828
    %892 = vmatpush.bf16.msra.mxu0 %v827
    %893 = vmatpush.bf16.msra.mxu0 %v826
    %894 = vmatpush.bf16.msra.mxu0 %v825
    %895 = vmatpush.bf16.msra.mxu0 %v824
    %896 = vmatmul.bf16.gmra.mxu0 %v688
    %v897 = vpop.f32.mrf.mxu0
    %v898 = vadd.f32 0.0, %v897
    %v899 = vpop.f32.mrf.mxu0
    %v900 = vadd.f32 0.0, %v899
    %901 = vdwg.mxu0
    %902 = vmatpush.bf16.msra.mxu0 %v839
    %903 = vmatpush.bf16.msra.mxu0 %v838
    %904 = vmatpush.bf16.msra.mxu0 %v837
    %905 = vmatpush.bf16.msra.mxu0 %v836
    %906 = vmatpush.bf16.msra.mxu0 %v835
    %907 = vmatpush.bf16.msra.mxu0 %v834
    %908 = vmatpush.bf16.msra.mxu0 %v833
    %909 = vmatpush.bf16.msra.mxu0 %v832
    %910 = vmatmul.bf16.gmra.mxu0 %v689
    %v911 = vpop.f32.mrf.mxu0
    %v912 = vadd.f32 %v898, %v911
    %v913 = vpop.f32.mrf.mxu0
    %v914 = vadd.f32 %v900, %v913
    %915 = vdwg.mxu0
    %916 = vmatpush.bf16.msra.mxu0 %v847
    %917 = vmatpush.bf16.msra.mxu0 %v846
    %918 = vmatpush.bf16.msra.mxu0 %v845
    %919 = vmatpush.bf16.msra.mxu0 %v844
    %920 = vmatpush.bf16.msra.mxu0 %v843
    %921 = vmatpush.bf16.msra.mxu0 %v842
    %922 = vmatpush.bf16.msra.mxu0 %v841
    %923 = vmatpush.bf16.msra.mxu0 %v840
    %924 = vmatmul.bf16.gmra.mxu0 %v690
    %v925 = vpop.f32.mrf.mxu0
    %v926 = vadd.f32 %v912, %v925
    %v927 = vpop.f32.mrf.mxu0
    %v928 = vadd.f32 %v914, %v927
    %929 = vdwg.mxu0
    %930 = vmatpush.bf16.msra.mxu0 %v855
    %931 = vmatpush.bf16.msra.mxu0 %v854
    %932 = vmatpush.bf16.msra.mxu0 %v853
    %933 = vmatpush.bf16.msra.mxu0 %v852
    %934 = vmatpush.bf16.msra.mxu0 %v851
    %935 = vmatpush.bf16.msra.mxu0 %v850
    %936 = vmatpush.bf16.msra.mxu0 %v849
    %937 = vmatpush.bf16.msra.mxu0 %v848
    %938 = vmatmul.bf16.gmra.mxu0 %v691
    %v939 = vpop.f32.mrf.mxu0
    %v940 = vadd.f32 %v926, %v939
    %v941 = vpop.f32.mrf.mxu0
    %v942 = vadd.f32 %v928, %v941
    %943 = vdwg.mxu0
    %v944 = vpack.c.bf16 %v940, %v940
    %v945 = vpack.c.bf16 %v942, %v942
    %946 = vst [vmem:[#allocation8] sm:$0xf] %v944
    %947 = vst [vmem:[#allocation8 + $0x4] sm:$0xf] %v945
    // Predicated region
    $region42: #{tpu_custom_call.1} parent=1 // pred_check
      _
    $region43: #{tpu_custom_call.1} parent=1 // pred_check_branch
      %949 = sbr.rel (0) target = $region45
    $region44: #{tpu_custom_call.1} parent=1 // pred_region
      %951 = vsyncadd [#allocation4], 0
      %s952 = sshll.u32 [#allocation8], 4
      %s953 = int_to_ptr.vmem [resolvable:$true] %s952
      %s954 = sshll.u32 %s6, 4
      %s955 = int_to_ptr.hbm [resolvable:$true] %s954
      %960 = dma.vmem_to_hbm [thread:$0]  %s953, 128, %s955, [#allocation4], 64, 64, 4
    $region45: #{tpu_custom_call.1} parent=1 // pred_fallthru
      _
    // Predicated region
    $region46: #{tpu_custom_call.1} parent=1 // pred_check
      _
    $region47: #{tpu_custom_call.1} parent=1 // pred_check_branch
      %962 = sbr.rel (0) target = $region49
    $region48: #{tpu_custom_call.1} parent=1 // pred_region
      %964 = vsyncadd [#allocation10], 0
      %s965 = sshll.u32 [#allocation9], 4
      %s966 = int_to_ptr.vmem [resolvable:$true] %s965
      %s967 = sshll.u32 %s7, 4
      %s968 = int_to_ptr.hbm [resolvable:$true] %s967
      %973 = dma.vmem_to_hbm [thread:$0]  %s966, 512, %s968, [#allocation10], 256, 256, 16
    $region49: #{tpu_custom_call.1} parent=1 // pred_fallthru
      _
    // Predicated region
    $region50: #{tpu_custom_call.1} parent=1 // pred_check
      _
    $region51: #{tpu_custom_call.1} parent=1 // pred_check_branch
      %975 = sbr.rel (0) target = $region53
    $region52: #{tpu_custom_call.1} parent=1 // pred_region
      %977 = dma.done [#allocation4], 128
    $region53: #{tpu_custom_call.1} parent=1 // pred_fallthru
      _
    // Predicated region
    $region54: #{tpu_custom_call.1} parent=1 // pred_check
      _
    $region55: #{tpu_custom_call.1} parent=1 // pred_check_branch
      %979 = sbr.rel (0) target = $region57
    $region56: #{tpu_custom_call.1} parent=1 // pred_region
      %981 = dma.done [#allocation10], 512
    $region57: #{tpu_custom_call.1} parent=1 // pred_fallthru
      _
    %982 = vsyncpa [#allocation3], 1
    %983 = vsyncpa [#allocation6], 1
    %984 = vsyncpa [#allocation4], 1
    %985 = vsyncpa [#allocation10], 1

</llo_original>
